<compile_context>
chip_gen: v7x
topology: tpu7x:2x2x1
jax: 0.10.0
libtpu: 0.0.40
codegen_flags: <defaults>
</compile_context>

<pallas_src>
import math
import functools

import jax
import jax.numpy as jnp
from jax.experimental import pallas as pl
from jax.experimental.pallas import tpu as pltpu


def _qkv_attention_kernel(qkv_ref, o_ref, *, scale_sq):
    # qkv_ref block: (1, 3, G, C, T);  o_ref block: (1, G, C, T)
    q = qkv_ref[0, 0] * scale_sq        # (G, C, T); both scale factors folded here
    k = qkv_ref[0, 1]                   # (G, C, T)
    v = qkv_ref[0, 2]                   # (G, C, T)

    # logits[g, t, s] = sum_c q[g, c, t] * k[g, c, s]
    # Batched dot_general contracting on c -> no explicit transposes, MXU-accumulated in f32.
    w = jnp.einsum("gct,gcs->gts", q, k, preferred_element_type=jnp.float32)

    # Softmax over s, in float32 (matches weight.float() in the torch module).
    w = w - jnp.max(w, axis=-1, keepdims=True)
    w = jnp.exp(w)
    w = w * pl.reciprocal(jnp.sum(w, axis=-1, keepdims=True), approx=True)
    w = w.astype(v.dtype)               # matches .type(weight.dtype)

    # a[g, c, t] = sum_s v[g, c, s] * w[g, t, s]  (contraction on s; transpose-free)
    a = jnp.einsum("gcs,gts->gct", v, w, preferred_element_type=jnp.float32)
    o_ref[0] = a.astype(o_ref.dtype)


def qkv_attention(qkv: jax.Array, n_heads: int, *, head_group: int | None = None) -> jax.Array:
    """Pallas implementation of QKVAttention.forward.

    qkv: [N, 3*H*C, T]  ->  returns [N, H*C, T]
    """
    bs, width, length = qkv.shape
    assert width % (3 * n_heads) == 0
    ch = width // (3 * n_heads)
    scale = 1.0 / math.sqrt(math.sqrt(ch))
    scale_sq = scale * scale            # = ch ** -0.5

    # Free view (no HBM copy): [N, 3*H*C, T] -> [N, 3, H, C, T].
    qkv5 = qkv.reshape(bs, 3, n_heads, ch, length)

    itemsize = jnp.dtype(qkv.dtype).itemsize

    def vmem_estimate(g: int) -> int:
        blk_in = 3 * g * ch * length * itemsize          # one (1,3,G,C,T) input block
        blk_out = g * ch * length * itemsize             # one (1,G,C,T) output block
        logits = g * length * length * (4 + itemsize)    # f32 logits + cast copy
        return 2 * (blk_in + blk_out) + logits           # double-buffered blocks + scratch

    # Per-chip VMEM budget (v7x has 64 MiB/TC vs 128 MiB on v5e/v6e); leave headroom.
    try:
        vmem_cap = int(getattr(pltpu.get_tpu_info(), "vmem_capacity_bytes", 64 << 20))
    except Exception:  # pragma: no cover - query not available
        vmem_cap = 64 << 20
    vmem_budget = int(0.75 * vmem_cap)

    # Pick the largest head-group size G (divisor of H) whose footprint fits the budget.
    if head_group is None:
        head_group = 1
        for g in range(1, n_heads + 1):
            if n_heads % g == 0 and vmem_estimate(g) <= vmem_budget:
                head_group = g
    G = head_group
    assert n_heads % G == 0

    vmem_limit = int(min(max(2 * vmem_estimate(G) + (4 << 20), 32 << 20), vmem_budget))

    grid = (bs, n_heads // G)
    in_spec = pl.BlockSpec((1, 3, G, ch, length), lambda n, h: (n, 0, h, 0, 0))
    out_spec = pl.BlockSpec((1, G, ch, length), lambda n, h: (n, h, 0, 0))

    kernel = functools.partial(_qkv_attention_kernel, scale_sq=scale_sq)

    out = pl.pallas_call(
        kernel,
        out_shape=jax.ShapeDtypeStruct((bs, n_heads, ch, length), qkv.dtype),
        grid_spec=pltpu.PrefetchScalarGridSpec(
            num_scalar_prefetch=0,
            grid=grid,
            in_specs=[in_spec],
            out_specs=out_spec,
        ),
        compiler_params=pltpu.CompilerParams(
            dimension_semantics=("parallel", "parallel"),
            vmem_limit_bytes=vmem_limit,
        ),
    )(qkv5)

    # Free view back to the module's output layout.
    return out.reshape(bs, n_heads * ch, length)


def _reference_qkv_attention(qkv, n_heads):
    """Pure-JAX reference mirroring the PyTorch forward, for validation."""
    bs, width, length = qkv.shape
    ch = width // (3 * n_heads)
    q, k, v = jnp.split(qkv, 3, axis=1)
    q = q.reshape(bs * n_heads, ch, length)
    k = k.reshape(bs * n_heads, ch, length)
    v = v.reshape(bs * n_heads, ch, length)
    scale = 1.0 / math.sqrt(math.sqrt(ch))
    w = jnp.einsum("bct,bcs->bts", q * scale, k * scale)
    w = jax.nn.softmax(w.astype(jnp.float32), axis=-1).astype(w.dtype)
    a = jnp.einsum("bts,bcs->bct", w, v)
    return a.reshape(bs, -1, length)


if __name__ == "__main__":
    # Small shapes consistent with the module: N=2, H=2, C=8, T=16 -> width = 3*H*C = 48.
    n_heads = 2
    N, C, T = 2, 8, 16
    width = 3 * n_heads * C

    key = jax.random.PRNGKey(0)
    qkv = jax.random.normal(key, (N, width, T), dtype=jnp.float32)

    out = qkv_attention(qkv, n_heads)
    out = jax.block_until_ready(out)

    ref = _reference_qkv_attention(qkv, n_heads)
    assert out.shape == (N, n_heads * C, T), out.shape
    # Tolerance accounts for pl.reciprocal(approx=True) in the softmax denominator (~1e-3 rel).
    assert jnp.allclose(out, ref, atol=1e-2, rtol=1e-2), "mismatch vs reference"

    print("KERNEL_OK")
</pallas_src>

<mosaic_0001>
module attributes {stable_mosaic.version = 11 : i64} {
  func.func @_qkv_attention_kernel(%arg0: i32, %arg1: i32, %arg2: memref<1x3x2x8x16xf32, #tpu.memory_space<vmem>>, %arg3: memref<1x2x8x16xf32, #tpu.memory_space<vmem>>) attributes {dimension_semantics = [#tpu.dimension_semantics<parallel>, #tpu.dimension_semantics<parallel>], iteration_bounds = array<i64: 2, 1>, scalar_prefetch = 0 : i64, scratch_operands = 0 : i64, tpu.core_type = #tpu.core_type<tc>, window_params = [{transform_indices = @transform_0, window_bounds = array<i64: 1, 3, 2, 8, 16>}, {transform_indices = @transform_1, window_bounds = array<i64: 1, 2, 8, 16>}]} {
    %c0 = arith.constant 0 : index
    %c0_0 = arith.constant 0 : index
    %c0_1 = arith.constant 0 : index
    %c0_2 = arith.constant 0 : index
    %c0_3 = arith.constant 0 : index
    %0 = vector.load %arg2[%c0, %c0_0, %c0_1, %c0_2, %c0_3] : memref<1x3x2x8x16xf32, #tpu.memory_space<vmem>>, vector<1x1x2x8x16xf32>
    %1 = vector.shape_cast %0 : vector<1x1x2x8x16xf32> to vector<2x8x16xf32>
    %cst = arith.constant 0.353553385 : f32
    %2 = vector.broadcast %cst : f32 to vector<2x8x16xf32>
    %3 = arith.mulf %1, %2 : vector<2x8x16xf32>
    %c0_4 = arith.constant 0 : index
    %c1 = arith.constant 1 : index
    %c0_5 = arith.constant 0 : index
    %c0_6 = arith.constant 0 : index
    %c0_7 = arith.constant 0 : index
    %4 = vector.load %arg2[%c0_4, %c1, %c0_5, %c0_6, %c0_7] : memref<1x3x2x8x16xf32, #tpu.memory_space<vmem>>, vector<1x1x2x8x16xf32>
    %5 = vector.shape_cast %4 : vector<1x1x2x8x16xf32> to vector<2x8x16xf32>
    %c0_8 = arith.constant 0 : index
    %c2 = arith.constant 2 : index
    %c0_9 = arith.constant 0 : index
    %c0_10 = arith.constant 0 : index
    %c0_11 = arith.constant 0 : index
    %6 = vector.load %arg2[%c0_8, %c2, %c0_9, %c0_10, %c0_11] : memref<1x3x2x8x16xf32, #tpu.memory_space<vmem>>, vector<1x1x2x8x16xf32>
    %7 = vector.shape_cast %6 : vector<1x1x2x8x16xf32> to vector<2x8x16xf32>
    "tpu.trace_start"() <{level = 10 : i32, message = "gct,gcs->gts"}> : () -> ()
    %cst_12 = arith.constant dense<0.000000e+00> : vector<2x16x16xf32>
    %8 = tpu.matmul %3, %5, %cst_12 {dimension_numbers = #tpu.dot_dimension_numbers<[1], [1], [2], [2], [0, 0, 0, 2, 1, 2], [0], [0]>} : vector<2x8x16xf32>, vector<2x8x16xf32>, vector<2x16x16xf32> -> vector<2x16x16xf32>
    "tpu.trace_stop"() : () -> ()
    %cst_13 = arith.constant dense<0xFF800000> : vector<2x16xf32>
    %9 = vector.multi_reduction <maximumf>, %8, %cst_13 [2] : vector<2x16x16xf32> to vector<2x16xf32>
    %10 = vector.shape_cast %9 : vector<2x16xf32> to vector<2x16x1xf32>
    %11 = vector.broadcast %10 : vector<2x16x1xf32> to vector<2x16x16xf32>
    %12 = arith.subf %8, %11 : vector<2x16x16xf32>
    %13 = math.exp %12 : vector<2x16x16xf32>
    %cst_14 = arith.constant dense<0.000000e+00> : vector<2x16xf32>
    %14 = vector.multi_reduction <add>, %13, %cst_14 [2] : vector<2x16x16xf32> to vector<2x16xf32>
    %15 = vector.shape_cast %14 : vector<2x16xf32> to vector<2x16x1xf32>
    %16 = tpu.reciprocal %15 {approx = true} : vector<2x16x1xf32> -> vector<2x16x1xf32>
    %17 = vector.broadcast %16 : vector<2x16x1xf32> to vector<2x16x16xf32>
    %18 = arith.mulf %13, %17 : vector<2x16x16xf32>
    "tpu.trace_start"() <{level = 10 : i32, message = "gcs,gts->gct"}> : () -> ()
    %cst_15 = arith.constant dense<0.000000e+00> : vector<2x8x16xf32>
    %19 = tpu.matmul %7, %18, %cst_15 {dimension_numbers = #tpu.dot_dimension_numbers<[2], [2], [1], [1], [0, 0, 0, 1, 1, 1], [0], [0]>} : vector<2x8x16xf32>, vector<2x16x16xf32>, vector<2x8x16xf32> -> vector<2x8x16xf32>
    "tpu.trace_stop"() : () -> ()
    %c0_16 = arith.constant 0 : index
    %c0_17 = arith.constant 0 : index
    %c0_18 = arith.constant 0 : index
    %c0_19 = arith.constant 0 : index
    %20 = vector.load %arg3[%c0_16, %c0_17, %c0_18, %c0_19] : memref<1x2x8x16xf32, #tpu.memory_space<vmem>>, vector<1x2x8x16xf32>
    %21 = vector.shape_cast %20 : vector<1x2x8x16xf32> to vector<2x8x16xf32>
    %22 = vector.shape_cast %19 : vector<2x8x16xf32> to vector<1x2x8x16xf32>
    tpu.vector_store %arg3[%c0_16, %c0_17, %c0_18, %c0_19], %22 {strides = array<i32>} : memref<1x2x8x16xf32, #tpu.memory_space<vmem>>, vector<1x2x8x16xf32>,
    return
  }
  func.func @transform_0(%arg0: i32, %arg1: i32) -> (i32, i32, i32, i32, i32) {
    %c0_i32 = arith.constant 0 : i32
    %c0_i32_0 = arith.constant 0 : i32
    %c0_i32_1 = arith.constant 0 : i32
    %c0_i32_2 = arith.constant 0 : i32
    return %arg0, %c0_i32, %arg1, %c0_i32_0, %c0_i32_1 : i32, i32, i32, i32, i32
  }
  func.func @transform_1(%arg0: i32, %arg1: i32) -> (i32, i32, i32, i32) {
    %c0_i32 = arith.constant 0 : i32
    %c0_i32_0 = arith.constant 0 : i32
    %c0_i32_1 = arith.constant 0 : i32
    return %arg0, %arg1, %c0_i32, %c0_i32_0 : i32, i32, i32, i32
  }
}

</mosaic_0001>

<llo_original>
// kernel: tpu_custom_call.1
$region0: #{tpu_custom_call.1}
  #allocation0 [shape = 'u32[]', space=smem, size = 0x4, offset = 0x4, fixed_abs, tag = 'smem constant byte address 0x4 - core index']
  #allocation1 [shape = 'u32[144,128]{1,0:T(1,128)}', space=vmem, size = 0x12000, scoped, tag = 'internal scratch']
  %s0 = inlined_call_operand.hbm [shape: f32[2,3,2,8,16], index: 0, kind: input, shape index: {}]
  %s1 = inlined_call_operand.hbm [shape: f32[2,2,8,16], index: 1, kind: output, shape index: {}]
  %s2 = sld [smem:[#allocation0]]
  $region41: #{tpu_custom_call.1} parent=0
    _
  %s4 = ssub.s32 1, %s2
  %s5 = scalar_select 0, %s4, %s2
  $region1: #{tpu_custom_call.1} parent=0
    #allocation2 [shape = 'u8[49152]{0}', space=vmem, size = 0xc000, scoped, tag = 'input window, operand 0']
    #allocation3 [shape = 's32[2]{0}', space=sflag, size = 0x8, scoped, tag = 'scoped memory for tpu_custom_call.1']
    #allocation4 [shape = 's32[2]{0}', space=sflag, size = 0x8, scoped, tag = 'scoped memory for tpu_custom_call.1']
    #allocation5 [shape = 'u8[16384]{0}', space=vmem, size = 0x4000, scoped, tag = 'output window, operand 0']
    %6 = vsyncpa [#allocation3], 0
    %s7 = scalar_lea.sflag [#allocation3], 1
    %8 = vsyncpa %s7, 0
    %9 = vsyncpa [#allocation4], 0
    %s10 = scalar_lea.sflag [#allocation4], 1
    %11 = vsyncpa %s10, 0
    loop: start=0, step=1, limit=4
    $region2: #{tpu_custom_call.1} parent=1 // loop_pre_header
      _
    $region3: #{tpu_custom_call.1} parent=1 // loop_header
      %s13 = sphi 0, %s17
      %p14 = scmp.ge.s32.totalorder %s13, 4
      %s20 = sphi 0, %s32
      %s21 = sphi 0, %s28
      %s22 = sphi 0, %s20
      %s23 = sphi 0, %s21
      %s24 = sphi 0, %s22
      %s25 = sphi 0, %s23
      %s37 = sphi 0, %s39
      %s40 = sphi 0, %s37
      %s41 = sphi 0, %s40
      %s57 = sphi 0, %s41
      %s65 = sphi 0, %s67
      %s68 = sphi 0, %s65
      %s69 = sphi 0, %s68
      %s85 = sphi 0, %s69
    $region4: #{tpu_custom_call.1} parent=1 // loop_header_branch
      %16 = sbr.rel (%p14) target = $region8
    $region5: #{tpu_custom_call.1} parent=1 // loop_body
      %s18 = ssub.s32 %s13, 1
      %s19 = ssub.s32 %s13, 2
      %s26 = sadd.s32 1, %s21
      %p27 = scmp.ge.s32.totalorder %s26, 1
      %s28 = scalar_select %p27, 0, %s26
      %s29 = sadd.s32 1, %s20
      %s30 = scalar_select %p27, %s29, %s20
      %p31 = scmp.ge.s32.totalorder %s30, 2
      %s32 = scalar_select %p31, 0, %s30
      %s33 = ssub.s32 %s20, %s32
      %s34 = ssub.s32 %s21, %s28
      %s35 = sor.u32 %s33, %s34
      %p36 = scmp.eq.s32.totalorder %s35, 0
      %s38 = sadd.s32 %s37, 1
      %s39 = scalar_select %p36, %s37, %s38
      %p42 = pneg %p36
      %p43 = scmp.eq.s32.totalorder %s13, 1
      %p44 = por %p42, %p43
      %p45 = scmp.ne.s32.totalorder %s37, %s40
      %p46 = scmp.eq.s32.totalorder %s13, 0
      %p47 = por %p45, %p46
      %p48 = scmp.ne.s32.totalorder %s37, %s40
      %p49 = scmp.eq.s32.totalorder %s18, 1
      %p50 = por %p48, %p49
      %p51 = scmp.ne.s32.totalorder %s40, %s41
      %p52 = scmp.eq.s32.totalorder %s18, 0
      %p53 = por %p51, %p52
      %p54 = scmp.ne.s32.totalorder %s40, %s41
      %p55 = scmp.eq.s32.totalorder %s19, 1
      %p56 = por %p54, %p55
      %p58 = scmp.ne.s32.totalorder %s41, %s57
      %p59 = scmp.eq.s32.totalorder %s19, 0
      %p60 = por %p58, %p59
      %s61 = ssub.s32 %s20, %s32
      %s62 = ssub.s32 %s21, %s28
      %s63 = sor.u32 %s61, %s62
      %p64 = scmp.eq.s32.totalorder %s63, 0
      %s66 = sadd.s32 %s65, 1
      %s67 = scalar_select %p64, %s65, %s66
      %p70 = pneg %p64
      %p71 = scmp.eq.s32.totalorder %s13, 1
      %p72 = por %p70, %p71
      %p73 = scmp.ne.s32.totalorder %s65, %s68
      %p74 = scmp.eq.s32.totalorder %s13, 0
      %p75 = por %p73, %p74
      %p76 = scmp.ne.s32.totalorder %s65, %s68
      %p77 = scmp.eq.s32.totalorder %s18, 1
      %p78 = por %p76, %p77
      %p79 = scmp.ne.s32.totalorder %s68, %s69
      %p80 = scmp.eq.s32.totalorder %s18, 0
      %p81 = por %p79, %p80
      %p82 = scmp.ne.s32.totalorder %s68, %s69
      %p83 = scmp.eq.s32.totalorder %s19, 1
      %p84 = por %p82, %p83
      %p86 = scmp.ne.s32.totalorder %s69, %s85
      %p87 = scmp.eq.s32.totalorder %s19, 0
      %p88 = por %p86, %p87
      %p89 = scmp.le.s32.totalorder 1, %s13
      %p90 = scmp.lt.s32.totalorder %s13, 3
      %p91 = pnand %p89, %p90
      %p92 = pneg %p91
      // Predicated region
      $region9: #{tpu_custom_call.1} parent=5 // pred_check
        _
      $region10: #{tpu_custom_call.1} parent=5 // pred_check_branch
        %94 = sbr.rel (%p91) target = $region12
      $region11: #{tpu_custom_call.1} parent=5 // pred_region
        %s95 = ssub.s32 %s13, 1
      $region12: #{tpu_custom_call.1} parent=5 // pred_fallthru
        _
      %p96 = scmp.lt.s32.totalorder %s13, 2
      // Predicated region
      $region13: #{tpu_custom_call.1} parent=5 // pred_check
        %p97 = pneg %p96
      $region14: #{tpu_custom_call.1} parent=5 // pred_check_branch
        %99 = sbr.rel (%p97) target = $region16
      $region15: #{tpu_custom_call.1} parent=5 // pred_region
        // Predicated region
        $region17: #{tpu_custom_call.1} parent=15 // pred_check
          %p100 = pneg %p47
        $region18: #{tpu_custom_call.1} parent=15 // pred_check_branch
          %102 = sbr.rel (%p100) target = $region20
        $region19: #{tpu_custom_call.1} parent=15 // pred_region
          %s103 = sand.u32 %s37, 1
          %s104 = scalar_lea.sflag [#allocation3], %s103
          %s105 = sand.u32 %s37, 1
          %s106 = smul.addr %s105, 48
          %s107 = scalar_lea.vmem [#allocation2], %s106
          %s108 = smul.u32 2, %s21
          %s110 = ssub.s32 768, 768
          %111 = vsyncadd %s104, %s110
          %s112 = smul.addr %s20, 6
          %s113 = sadd.s32 %s108, %s112
          %s114 = smul.addr %s113, 128
          %s115 = scalar_lea.hbm %s0, %s114
          %s116 = sshll.u32 %s107, 4
          %s117 = int_to_ptr.vmem [resolvable:$true] %s116
          %122 = dma.hbm_to_vmem [thread:$0]  %s115, 768, %s117, %s104, 128, 128, 8
        $region20: #{tpu_custom_call.1} parent=15 // pred_fallthru
          _
      $region16: #{tpu_custom_call.1} parent=5 // pred_fallthru
        _
      %p123 = scmp.le.s32.totalorder 1, %s13
      %p124 = scmp.lt.s32.totalorder %s13, 3
      %p125 = pnand %p123, %p124
      %p126 = pneg %p125
      // Predicated region
      $region21: #{tpu_custom_call.1} parent=5 // pred_check
        _
      $region22: #{tpu_custom_call.1} parent=5 // pred_check_branch
        %128 = sbr.rel (%p125) target = $region24
      $region23: #{tpu_custom_call.1} parent=5 // pred_region
        %s129 = ssub.s32 %s13, 1
        %s130 = sand.u32 %s40, 1
        %s131 = scalar_lea.sflag [#allocation3], %s130
        %s132 = sand.u32 %s40, 1
        %s133 = smul.addr %s132, 48
        %s134 = scalar_lea.vmem [#allocation2], %s133
        // Predicated region
        $region25: #{tpu_custom_call.1} parent=23 // pred_check
          %p135 = pneg %p53
        $region26: #{tpu_custom_call.1} parent=23 // pred_check_branch
          %137 = sbr.rel (%p135) target = $region28
        $region27: #{tpu_custom_call.1} parent=23 // pred_region
          %138 = dma.done %s131, 768
        $region28: #{tpu_custom_call.1} parent=23 // pred_fallthru
          _
        %s139 = sand.u32 %s40, 1
        %s140 = scalar_lea.sflag [#allocation3], %s139
        %s141 = sand.u32 %s40, 1
        %s142 = smul.addr %s141, 48
        %s143 = scalar_lea.vmem [#allocation2], %s142
        %p144 = pneg %p53
        %p145 = pneg %p50
        %p146 = pneg %p81
        %p147 = pneg %p78
        %s148 = sand.u32 %s68, 1
        %s149 = scalar_lea.sflag [#allocation4], %s148
        %s150 = sand.u32 %s68, 1
        %s151 = smul.addr %s150, 16
        %s152 = scalar_lea.vmem [#allocation5], %s151
        %s153 = smul.u32 2, %s23
        %s154 = smul.u32 2, %s23
        %v155 = vld [vmem:[%s134] sm:$0xff]
        %v156 = vld [vmem:[%s134 + $0x8] sm:$0xff]
        %v157 = vmul.f32 %v155, 0.35355338
        %v158 = vmul.f32 %v156, 0.35355338
        %s159 = scalar_lea.vmem %s134, 16 [#allocation2]
        %v160 = vld [vmem:[%s159] sm:$0xff]
        %v161 = vld [vmem:[%s159 + $0x8] sm:$0xff]
        %s162 = scalar_lea.vmem %s134, 32 [#allocation2]
        %v163 = vld [vmem:[%s162] sm:$0xff]
        %v164 = vld [vmem:[%s162 + $0x8] sm:$0xff]
        %165 = vxpose.xlu0.b32.start [1/16] %v157, 128
        %166 = vxpose.xlu0.b32.cont [2/16] 0.0, 128
        %167 = vxpose.xlu0.b32.cont [3/16] 0.0, 128
        %168 = vxpose.xlu0.b32.cont [4/16] 0.0, 128
        %169 = vxpose.xlu0.b32.cont [5/16] 0.0, 128
        %170 = vxpose.xlu0.b32.cont [6/16] 0.0, 128
        %171 = vxpose.xlu0.b32.cont [7/16] 0.0, 128
        %172 = vxpose.xlu0.b32.cont [8/16] 0.0, 128
        %173 = vxpose.xlu0.b32.cont [9/16] 0.0, 128
        %174 = vxpose.xlu0.b32.cont [10/16] 0.0, 128
        %175 = vxpose.xlu0.b32.cont [11/16] 0.0, 128
        %176 = vxpose.xlu0.b32.cont [12/16] 0.0, 128
        %177 = vxpose.xlu0.b32.cont [13/16] 0.0, 128
        %178 = vxpose.xlu0.b32.cont [14/16] 0.0, 128
        %179 = vxpose.xlu0.b32.cont [15/16] 0.0, 128
        %180 = vxpose.xlu0.b32.end [16/16] 0.0, 128
        %v181 = vpop.trf.xlu0
        %v182 = vpop.trf.xlu0
        %v183 = vpop.trf.xlu0
        %v184 = vpop.trf.xlu0
        %v185 = vpop.trf.xlu0
        %v186 = vpop.trf.xlu0
        %v187 = vpop.trf.xlu0
        %v188 = vpop.trf.xlu0
        %v189 = vpop.trf.xlu0
        %v190 = vpop.trf.xlu0
        %v191 = vpop.trf.xlu0
        %v192 = vpop.trf.xlu0
        %v193 = vpop.trf.xlu0
        %v194 = vpop.trf.xlu0
        %v195 = vpop.trf.xlu0
        %v196 = vpop.trf.xlu0
        %vm197 = vcmask 64512
        %v199 = vsel %vm197, %v181, 0
        %v202 = vsel %vm197, %v182, 0
        %204 = vmatprep.subr.mxu0 0.0
        %205 = vmatpush1.msra.mxu0 %v160
        %206 = vmatprep.subr.mxu0 0.0
        %207 = vmatpush1.msra.mxu0 0.0
        %208 = vmatprep.subr.mxu0 0.0
        %209 = vmatpush1.msra.mxu0 0.0
        %210 = vmatprep.subr.mxu0 0.0
        %211 = vmatpush1.msra.mxu0 0.0
        %212 = vmatprep.subr.mxu0 0.0
        %213 = vmatpush1.msra.mxu0 0.0
        %214 = vmatprep.subr.mxu0 0.0
        %215 = vmatpush1.msra.mxu0 0.0
        %216 = vmatprep.subr.mxu0 0.0
        %217 = vmatpush1.msra.mxu0 0.0
        %218 = vmatprep.subr.mxu0 0.0
        %219 = vmatpush1.msra.mxu0 0.0
        %220 = vmatprep.subr.mxu0 0.0
        %221 = vmatpush1.msra.mxu0 0.0
        %222 = vmatprep.subr.mxu0 0.0
        %223 = vmatpush1.msra.mxu0 0.0
        %224 = vmatprep.subr.mxu0 0.0
        %225 = vmatpush1.msra.mxu0 0.0
        %226 = vmatprep.subr.mxu0 0.0
        %227 = vmatpush1.msra.mxu0 0.0
        %228 = vmatprep.subr.mxu0 0.0
        %229 = vmatpush1.msra.mxu0 0.0
        %230 = vmatprep.subr.mxu0 0.0
        %231 = vmatpush1.msra.mxu0 0.0
        %232 = vmatprep.subr.mxu0 0.0
        %233 = vmatpush1.msra.mxu0 0.0
        %234 = vmatprep.subr.mxu0 0.0
        %235 = vmatpush1.msra.mxu0 0.0
        %236 = vmatprep.subr.mxu0 0.0
        %237 = vmatpush1.msra.mxu0 0.0
        %238 = vmatprep.subr.mxu0 0.0
        %239 = vmatpush1.msra.mxu0 0.0
        %240 = vmatprep.subr.mxu0 0.0
        %241 = vmatpush1.msra.mxu0 0.0
        %242 = vmatprep.subr.mxu0 0.0
        %243 = vmatpush1.msra.mxu0 0.0
        %244 = vmatprep.subr.mxu0 0.0
        %245 = vmatpush1.msra.mxu0 0.0
        %246 = vmatprep.subr.mxu0 0.0
        %247 = vmatpush1.msra.mxu0 0.0
        %248 = vmatprep.subr.mxu0 0.0
        %249 = vmatpush1.msra.mxu0 0.0
        %250 = vmatprep.subr.mxu0 0.0
        %251 = vmatpush1.msra.mxu0 0.0
        %252 = vmatprep.subr.mxu0 0.0
        %253 = vmatpush1.msra.mxu0 0.0
        %254 = vmatprep.subr.mxu0 0.0
        %255 = vmatpush1.msra.mxu0 0.0
        %256 = vmatprep.subr.mxu0 0.0
        %257 = vmatpush1.msra.mxu0 0.0
        %258 = vmatprep.subr.mxu0 0.0
        %259 = vmatpush1.msra.mxu0 0.0
        %260 = vmatprep.subr.mxu0 0.0
        %261 = vmatpush1.msra.mxu0 0.0
        %262 = vmatprep.subr.mxu0 0.0
        %263 = vmatpush1.msra.mxu0 0.0
        %264 = vmatprep.subr.mxu0 0.0
        %265 = vmatpush1.msra.mxu0 0.0
        %266 = vmatprep.subr.mxu0 0.0
        %267 = vmatpush1.msra.mxu0 0.0
        %268 = vmatprep.mubr.f32.mxu0 0.0
        %269 = vmatmul.mubr.f32.gmra.mrb[0].mxu0 %v199
        %v270 = vpop.f32.mrb[0].mxu0
        %v271 = vadd.f32 0.0, %v270
        %v272 = vpop.f32.mrb[0].mxu0
        %273 = vmatprep.mubr.f32.mxu0 0.0
        %274 = vmatmul.mubr.f32.gmra.mrb[0].mxu0 %v202
        %v275 = vpop.f32.mrb[0].mxu0
        %v276 = vadd.f32 0.0, %v275
        %v277 = vpop.f32.mrb[0].mxu0
        %278 = vdwg.mxu0
        %279 = vxpose.xlu0.b32.start [1/16] %v158, 128
        %280 = vxpose.xlu0.b32.cont [2/16] 0.0, 128
        %281 = vxpose.xlu0.b32.cont [3/16] 0.0, 128
        %282 = vxpose.xlu0.b32.cont [4/16] 0.0, 128
        %283 = vxpose.xlu0.b32.cont [5/16] 0.0, 128
        %284 = vxpose.xlu0.b32.cont [6/16] 0.0, 128
        %285 = vxpose.xlu0.b32.cont [7/16] 0.0, 128
        %286 = vxpose.xlu0.b32.cont [8/16] 0.0, 128
        %287 = vxpose.xlu0.b32.cont [9/16] 0.0, 128
        %288 = vxpose.xlu0.b32.cont [10/16] 0.0, 128
        %289 = vxpose.xlu0.b32.cont [11/16] 0.0, 128
        %290 = vxpose.xlu0.b32.cont [12/16] 0.0, 128
        %291 = vxpose.xlu0.b32.cont [13/16] 0.0, 128
        %292 = vxpose.xlu0.b32.cont [14/16] 0.0, 128
        %293 = vxpose.xlu0.b32.cont [15/16] 0.0, 128
        %294 = vxpose.xlu0.b32.end [16/16] 0.0, 128
        %v295 = vpop.trf.xlu0
        %v296 = vpop.trf.xlu0
        %v297 = vpop.trf.xlu0
        %v298 = vpop.trf.xlu0
        %v299 = vpop.trf.xlu0
        %v300 = vpop.trf.xlu0
        %v301 = vpop.trf.xlu0
        %v302 = vpop.trf.xlu0
        %v303 = vpop.trf.xlu0
        %v304 = vpop.trf.xlu0
        %v305 = vpop.trf.xlu0
        %v306 = vpop.trf.xlu0
        %v307 = vpop.trf.xlu0
        %v308 = vpop.trf.xlu0
        %v309 = vpop.trf.xlu0
        %v310 = vpop.trf.xlu0
        %v312 = vsel %vm197, %v295, 0
        %v315 = vsel %vm197, %v296, 0
        %317 = vmatprep.subr.mxu0 0.0
        %318 = vmatpush1.msra.mxu0 %v161
        %319 = vmatprep.subr.mxu0 0.0
        %320 = vmatpush1.msra.mxu0 0.0
        %321 = vmatprep.subr.mxu0 0.0
        %322 = vmatpush1.msra.mxu0 0.0
        %323 = vmatprep.subr.mxu0 0.0
        %324 = vmatpush1.msra.mxu0 0.0
        %325 = vmatprep.subr.mxu0 0.0
        %326 = vmatpush1.msra.mxu0 0.0
        %327 = vmatprep.subr.mxu0 0.0
        %328 = vmatpush1.msra.mxu0 0.0
        %329 = vmatprep.subr.mxu0 0.0
        %330 = vmatpush1.msra.mxu0 0.0
        %331 = vmatprep.subr.mxu0 0.0
        %332 = vmatpush1.msra.mxu0 0.0
        %333 = vmatprep.subr.mxu0 0.0
        %334 = vmatpush1.msra.mxu0 0.0
        %335 = vmatprep.subr.mxu0 0.0
        %336 = vmatpush1.msra.mxu0 0.0
        %337 = vmatprep.subr.mxu0 0.0
        %338 = vmatpush1.msra.mxu0 0.0
        %339 = vmatprep.subr.mxu0 0.0
        %340 = vmatpush1.msra.mxu0 0.0
        %341 = vmatprep.subr.mxu0 0.0
        %342 = vmatpush1.msra.mxu0 0.0
        %343 = vmatprep.subr.mxu0 0.0
        %344 = vmatpush1.msra.mxu0 0.0
        %345 = vmatprep.subr.mxu0 0.0
        %346 = vmatpush1.msra.mxu0 0.0
        %347 = vmatprep.subr.mxu0 0.0
        %348 = vmatpush1.msra.mxu0 0.0
        %349 = vmatprep.subr.mxu0 0.0
        %350 = vmatpush1.msra.mxu0 0.0
        %351 = vmatprep.subr.mxu0 0.0
        %352 = vmatpush1.msra.mxu0 0.0
        %353 = vmatprep.subr.mxu0 0.0
        %354 = vmatpush1.msra.mxu0 0.0
        %355 = vmatprep.subr.mxu0 0.0
        %356 = vmatpush1.msra.mxu0 0.0
        %357 = vmatprep.subr.mxu0 0.0
        %358 = vmatpush1.msra.mxu0 0.0
        %359 = vmatprep.subr.mxu0 0.0
        %360 = vmatpush1.msra.mxu0 0.0
        %361 = vmatprep.subr.mxu0 0.0
        %362 = vmatpush1.msra.mxu0 0.0
        %363 = vmatprep.subr.mxu0 0.0
        %364 = vmatpush1.msra.mxu0 0.0
        %365 = vmatprep.subr.mxu0 0.0
        %366 = vmatpush1.msra.mxu0 0.0
        %367 = vmatprep.subr.mxu0 0.0
        %368 = vmatpush1.msra.mxu0 0.0
        %369 = vmatprep.subr.mxu0 0.0
        %370 = vmatpush1.msra.mxu0 0.0
        %371 = vmatprep.subr.mxu0 0.0
        %372 = vmatpush1.msra.mxu0 0.0
        %373 = vmatprep.subr.mxu0 0.0
        %374 = vmatpush1.msra.mxu0 0.0
        %375 = vmatprep.subr.mxu0 0.0
        %376 = vmatpush1.msra.mxu0 0.0
        %377 = vmatprep.subr.mxu0 0.0
        %378 = vmatpush1.msra.mxu0 0.0
        %379 = vmatprep.subr.mxu0 0.0
        %380 = vmatpush1.msra.mxu0 0.0
        %381 = vmatprep.mubr.f32.mxu0 0.0
        %382 = vmatmul.mubr.f32.gmra.mrb[0].mxu0 %v312
        %v383 = vpop.f32.mrb[0].mxu0
        %v384 = vadd.f32 0.0, %v383
        %v385 = vpop.f32.mrb[0].mxu0
        %386 = vmatprep.mubr.f32.mxu0 0.0
        %387 = vmatmul.mubr.f32.gmra.mrb[0].mxu0 %v315
        %v388 = vpop.f32.mrb[0].mxu0
        %v389 = vadd.f32 0.0, %v388
        %v390 = vpop.f32.mrb[0].mxu0
        %391 = vdwg.mxu0
        %vm392 = vcmask 130048
        %v393 = vsel %vm392, %v271, -inf
        %394 = vmax.xlane.f32.xlu0 %v393
        %v395 = vpop.xlane.xlu0 %394
        %v396 = vsel %vm392, %v276, -inf
        %397 = vmax.xlane.f32.xlu0 %v396
        %v398 = vpop.xlane.xlu0 %397
        %v399 = vsel %vm392, %v384, -inf
        %400 = vmax.xlane.f32.xlu0 %v399
        %v401 = vpop.xlane.xlu0 %400
        %v402 = vsel %vm392, %v389, -inf
        %403 = vmax.xlane.f32.xlu0 %v402
        %v404 = vpop.xlane.xlu0 %403
        %v405 = vsub.f32 %v271, %v395
        %v406 = vsub.f32 %v276, %v398
        %v407 = vsub.f32 %v384, %v401
        %v408 = vsub.f32 %v389, %v404
        %v409 = vmul.f32 %v405, 1.442695
        %v410 = vpow.pop %v409
        %v411 = vmul.f32 %v406, 1.442695
        %v412 = vpow.pop %v411
        %v413 = vmul.f32 %v407, 1.442695
        %v414 = vpow.pop %v413
        %v415 = vmul.f32 %v408, 1.442695
        %v416 = vpow.pop %v415
        %v417 = vsel %vm392, %v410, 0.0
        %418 = vadd.xlane.f32.xlu0 %v417
        %v419 = vpop.xlane.xlu0 %418
        %v420 = vsel %vm392, %v412, 0.0
        %421 = vadd.xlane.f32.xlu0 %v420
        %v422 = vpop.xlane.xlu0 %421
        %v423 = vsel %vm392, %v414, 0.0
        %424 = vadd.xlane.f32.xlu0 %v423
        %v425 = vpop.xlane.xlu0 %424
        %v426 = vsel %vm392, %v416, 0.0
        %427 = vadd.xlane.f32.xlu0 %v426
        %v428 = vpop.xlane.xlu0 %427
        %v429 = vrcp.pop %v419
        %v430 = vrcp.pop %v422
        %v431 = vrcp.pop %v425
        %v432 = vrcp.pop %v428
        %v433 = vmul.f32 %v410, %v429
        %v434 = vmul.f32 %v412, %v430
        %v435 = vmul.f32 %v414, %v431
        %v436 = vmul.f32 %v416, %v432
        %v438 = vsel %vm392, %v163, 0
        %v441 = vsel %vm392, %v433, 0
        %v444 = vsel %vm392, %v434, 0
        %446 = vmatprep.subr.mxu0 0.0
        %447 = vmatpush1.xpose.msra.mxu0 %v441
        %448 = vmatprep.subr.mxu0 0.0
        %449 = vmatpush1.xpose.msra.mxu0 %v444
        %450 = vmatprep.subr.mxu0 0.0
        %451 = vmatpush1.xpose.msra.mxu0 0.0
        %452 = vmatprep.subr.mxu0 0.0
        %453 = vmatpush1.xpose.msra.mxu0 0.0
        %454 = vmatprep.subr.mxu0 0.0
        %455 = vmatpush1.xpose.msra.mxu0 0.0
        %456 = vmatprep.subr.mxu0 0.0
        %457 = vmatpush1.xpose.msra.mxu0 0.0
        %458 = vmatprep.subr.mxu0 0.0
        %459 = vmatpush1.xpose.msra.mxu0 0.0
        %460 = vmatprep.subr.mxu0 0.0
        %461 = vmatpush1.xpose.msra.mxu0 0.0
        %462 = vmatprep.subr.mxu0 0.0
        %463 = vmatpush1.xpose.msra.mxu0 0.0
        %464 = vmatprep.subr.mxu0 0.0
        %465 = vmatpush1.xpose.msra.mxu0 0.0
        %466 = vmatprep.subr.mxu0 0.0
        %467 = vmatpush1.xpose.msra.mxu0 0.0
        %468 = vmatprep.subr.mxu0 0.0
        %469 = vmatpush1.xpose.msra.mxu0 0.0
        %470 = vmatprep.subr.mxu0 0.0
        %471 = vmatpush1.xpose.msra.mxu0 0.0
        %472 = vmatprep.subr.mxu0 0.0
        %473 = vmatpush1.xpose.msra.mxu0 0.0
        %474 = vmatprep.subr.mxu0 0.0
        %475 = vmatpush1.xpose.msra.mxu0 0.0
        %476 = vmatprep.subr.mxu0 0.0
        %477 = vmatpush1.xpose.msra.mxu0 0.0
        %478 = vmatprep.subr.mxu0 0.0
        %479 = vmatpush1.xpose.msra.mxu0 0.0
        %480 = vmatprep.subr.mxu0 0.0
        %481 = vmatpush1.xpose.msra.mxu0 0.0
        %482 = vmatprep.subr.mxu0 0.0
        %483 = vmatpush1.xpose.msra.mxu0 0.0
        %484 = vmatprep.subr.mxu0 0.0
        %485 = vmatpush1.xpose.msra.mxu0 0.0
        %486 = vmatprep.subr.mxu0 0.0
        %487 = vmatpush1.xpose.msra.mxu0 0.0
        %488 = vmatprep.subr.mxu0 0.0
        %489 = vmatpush1.xpose.msra.mxu0 0.0
        %490 = vmatprep.subr.mxu0 0.0
        %491 = vmatpush1.xpose.msra.mxu0 0.0
        %492 = vmatprep.subr.mxu0 0.0
        %493 = vmatpush1.xpose.msra.mxu0 0.0
        %494 = vmatprep.subr.mxu0 0.0
        %495 = vmatpush1.xpose.msra.mxu0 0.0
        %496 = vmatprep.subr.mxu0 0.0
        %497 = vmatpush1.xpose.msra.mxu0 0.0
        %498 = vmatprep.subr.mxu0 0.0
        %499 = vmatpush1.xpose.msra.mxu0 0.0
        %500 = vmatprep.subr.mxu0 0.0
        %501 = vmatpush1.xpose.msra.mxu0 0.0
        %502 = vmatprep.subr.mxu0 0.0
        %503 = vmatpush1.xpose.msra.mxu0 0.0
        %504 = vmatprep.subr.mxu0 0.0
        %505 = vmatpush1.xpose.msra.mxu0 0.0
        %506 = vmatprep.subr.mxu0 0.0
        %507 = vmatpush1.xpose.msra.mxu0 0.0
        %508 = vmatprep.subr.mxu0 0.0
        %509 = vmatpush1.xpose.msra.mxu0 0.0
        %510 = vmatprep.mubr.f32.mxu0 0.0
        %511 = vmatmul.mubr.f32.gmra.mrb[0].mxu0 %v438
        %v512 = vpop.f32.mrb[0].mxu0
        %v513 = vadd.f32 0.0, %v512
        %v514 = vpop.f32.mrb[0].mxu0
        %515 = vdwg.mxu0
        %v517 = vsel %vm392, %v164, 0
        %v520 = vsel %vm392, %v435, 0
        %v523 = vsel %vm392, %v436, 0
        %525 = vmatprep.subr.mxu0 0.0
        %526 = vmatpush1.xpose.msra.mxu0 %v520
        %527 = vmatprep.subr.mxu0 0.0
        %528 = vmatpush1.xpose.msra.mxu0 %v523
        %529 = vmatprep.subr.mxu0 0.0
        %530 = vmatpush1.xpose.msra.mxu0 0.0
        %531 = vmatprep.subr.mxu0 0.0
        %532 = vmatpush1.xpose.msra.mxu0 0.0
        %533 = vmatprep.subr.mxu0 0.0
        %534 = vmatpush1.xpose.msra.mxu0 0.0
        %535 = vmatprep.subr.mxu0 0.0
        %536 = vmatpush1.xpose.msra.mxu0 0.0
        %537 = vmatprep.subr.mxu0 0.0
        %538 = vmatpush1.xpose.msra.mxu0 0.0
        %539 = vmatprep.subr.mxu0 0.0
        %540 = vmatpush1.xpose.msra.mxu0 0.0
        %541 = vmatprep.subr.mxu0 0.0
        %542 = vmatpush1.xpose.msra.mxu0 0.0
        %543 = vmatprep.subr.mxu0 0.0
        %544 = vmatpush1.xpose.msra.mxu0 0.0
        %545 = vmatprep.subr.mxu0 0.0
        %546 = vmatpush1.xpose.msra.mxu0 0.0
        %547 = vmatprep.subr.mxu0 0.0
        %548 = vmatpush1.xpose.msra.mxu0 0.0
        %549 = vmatprep.subr.mxu0 0.0
        %550 = vmatpush1.xpose.msra.mxu0 0.0
        %551 = vmatprep.subr.mxu0 0.0
        %552 = vmatpush1.xpose.msra.mxu0 0.0
        %553 = vmatprep.subr.mxu0 0.0
        %554 = vmatpush1.xpose.msra.mxu0 0.0
        %555 = vmatprep.subr.mxu0 0.0
        %556 = vmatpush1.xpose.msra.mxu0 0.0
        %557 = vmatprep.subr.mxu0 0.0
        %558 = vmatpush1.xpose.msra.mxu0 0.0
        %559 = vmatprep.subr.mxu0 0.0
        %560 = vmatpush1.xpose.msra.mxu0 0.0
        %561 = vmatprep.subr.mxu0 0.0
        %562 = vmatpush1.xpose.msra.mxu0 0.0
        %563 = vmatprep.subr.mxu0 0.0
        %564 = vmatpush1.xpose.msra.mxu0 0.0
        %565 = vmatprep.subr.mxu0 0.0
        %566 = vmatpush1.xpose.msra.mxu0 0.0
        %567 = vmatprep.subr.mxu0 0.0
        %568 = vmatpush1.xpose.msra.mxu0 0.0
        %569 = vmatprep.subr.mxu0 0.0
        %570 = vmatpush1.xpose.msra.mxu0 0.0
        %571 = vmatprep.subr.mxu0 0.0
        %572 = vmatpush1.xpose.msra.mxu0 0.0
        %573 = vmatprep.subr.mxu0 0.0
        %574 = vmatpush1.xpose.msra.mxu0 0.0
        %575 = vmatprep.subr.mxu0 0.0
        %576 = vmatpush1.xpose.msra.mxu0 0.0
        %577 = vmatprep.subr.mxu0 0.0
        %578 = vmatpush1.xpose.msra.mxu0 0.0
        %579 = vmatprep.subr.mxu0 0.0
        %580 = vmatpush1.xpose.msra.mxu0 0.0
        %581 = vmatprep.subr.mxu0 0.0
        %582 = vmatpush1.xpose.msra.mxu0 0.0
        %583 = vmatprep.subr.mxu0 0.0
        %584 = vmatpush1.xpose.msra.mxu0 0.0
        %585 = vmatprep.subr.mxu0 0.0
        %586 = vmatpush1.xpose.msra.mxu0 0.0
        %587 = vmatprep.subr.mxu0 0.0
        %588 = vmatpush1.xpose.msra.mxu0 0.0
        %589 = vmatprep.mubr.f32.mxu0 0.0
        %590 = vmatmul.mubr.f32.gmra.mrb[0].mxu0 %v517
        %v591 = vpop.f32.mrb[0].mxu0
        %v592 = vadd.f32 0.0, %v591
        %v593 = vpop.f32.mrb[0].mxu0
        %594 = vdwg.mxu0
        %595 = vst.msk [vmem:[%s152] sm:$0xff] %vm392, %v513
        %596 = vst.msk [vmem:[%s152 + $0x8] sm:$0xff] %vm392, %v592
        %s597 = sand.u32 %s68, 1
        %s598 = scalar_lea.sflag [#allocation4], %s597
        %s599 = sand.u32 %s68, 1
        %s600 = smul.addr %s599, 16
        %s601 = scalar_lea.vmem [#allocation5], %s600
        // Predicated region
        $region29: #{tpu_custom_call.1} parent=23 // pred_check
          %p602 = pneg %p78
        $region30: #{tpu_custom_call.1} parent=23 // pred_check_branch
          %604 = sbr.rel (%p602) target = $region32
        $region31: #{tpu_custom_call.1} parent=23 // pred_region
          %s605 = smul.u32 2, %s23
          %s607 = ssub.s32 256, 256
          %608 = vsyncadd %s598, %s607
          %s609 = smul.addr %s22, 2
          %s610 = sadd.s32 %s605, %s609
          %s611 = smul.addr %s610, 128
          %s612 = scalar_lea.hbm %s1, %s611
          %s613 = sshll.u32 %s601, 4
          %s614 = int_to_ptr.vmem [resolvable:$true] %s613
          %619 = dma.vmem_to_hbm [thread:$0]  %s614, 256, %s612, %s598, 128, 128, 8
        $region32: #{tpu_custom_call.1} parent=23 // pred_fallthru
          _
      $region24: #{tpu_custom_call.1} parent=5 // pred_fallthru
        _
      %p620 = scmp.le.s32.totalorder 2, %s13
      // Predicated region
      $region33: #{tpu_custom_call.1} parent=5 // pred_check
        %p621 = pneg %p620
      $region34: #{tpu_custom_call.1} parent=5 // pred_check_branch
        %623 = sbr.rel (%p621) target = $region36
      $region35: #{tpu_custom_call.1} parent=5 // pred_region
        %s624 = ssub.s32 %s13, 2
        // Predicated region
        $region37: #{tpu_custom_call.1} parent=35 // pred_check
          %p625 = pneg %p84
        $region38: #{tpu_custom_call.1} parent=35 // pred_check_branch
          %627 = sbr.rel (%p625) target = $region40
        $region39: #{tpu_custom_call.1} parent=35 // pred_region
          %s628 = sand.u32 %s69, 1
          %s629 = scalar_lea.sflag [#allocation4], %s628
          %s630 = sand.u32 %s69, 1
          %s631 = smul.addr %s630, 16
          %s632 = scalar_lea.vmem [#allocation5], %s631
          %633 = dma.done %s629, 256
        $region40: #{tpu_custom_call.1} parent=35 // pred_fallthru
          _
      $region36: #{tpu_custom_call.1} parent=5 // pred_fallthru
        _
    $region6: #{tpu_custom_call.1} parent=1 // loop_footer
      %s17 = sadd.s32 1, %s13
    $region7: #{tpu_custom_call.1} parent=1 // loop_footer_branch
      %12 = sbr.rel target = $region3
    $region8: #{tpu_custom_call.1} parent=1 // loop_exit
      _
    %634 = vsyncpa [#allocation3], 1
    %s635 = scalar_lea.sflag [#allocation3], 1
    %636 = vsyncpa %s635, 1
    %637 = vsyncpa [#allocation4], 1
    %s638 = scalar_lea.sflag [#allocation4], 1
    %639 = vsyncpa %s638, 1

</llo_original>
